<compile_context>
chip_gen: v7x
topology: tpu7x:2x2x1
jax: 0.10.0
libtpu: 0.0.40
codegen_flags: <defaults>
</compile_context>

<pallas_src>
import functools

import jax
import jax.numpy as jnp
from jax.experimental import pallas as pl
from jax.experimental.pallas import tpu as pltpu

_LANES = 128
# Single-shot (ungridded) path up to 4096x128 f32 per input (~2 MiB each).
_SMALL_ROWS = 4096


def _bce_elementwise(p, y):
    # PyTorch's binary_cross_entropy clamps each log term at -100.
    log_p = jnp.maximum(jnp.log(p), -100.0)
    log_1mp = jnp.maximum(jnp.log(1.0 - p), -100.0)
    return -(y * log_p + (1.0 - y) * log_1mp)


def _bce_single_kernel(p_ref, y_ref, o_ref, *, total_n):
    """Whole problem in one VMEM-resident block: compute, reduce, write mean."""
    p = p_ref[...].astype(jnp.float32)
    y = y_ref[...].astype(jnp.float32)
    loss = _bce_elementwise(p, y)
    o_ref[...] = jnp.full((1, 1), jnp.sum(loss) / total_n, dtype=jnp.float32)


def _bce_tiled_kernel(p_ref, y_ref, o_ref, acc_ref, *, total_n):
    """Row-tiled path for large inputs with a VMEM (8,128) vector accumulator."""
    i = pl.program_id(0)

    @pl.when(i == 0)
    def _():
        acc_ref[...] = jnp.zeros_like(acc_ref)

    p = p_ref[...].astype(jnp.float32)
    y = y_ref[...].astype(jnp.float32)
    loss = _bce_elementwise(p, y)

    tr = loss.shape[0]
    # VPU elementwise accumulate into (8,128); the expensive cross-lane reduce
    # and the division only run once, in the last-step finalize.
    acc_ref[...] += jnp.sum(loss.reshape(tr // 8, 8, _LANES), axis=0)

    @pl.when(i == pl.num_programs(0) - 1)
    def _():
        o_ref[...] = jnp.full(
            (1, 1), jnp.sum(acc_ref[...]) / total_n, dtype=jnp.float32
        )


def _pad_flat(flat, multiple, value):
    """Pad a 1-D array up to a multiple. (p=1, y=1) pads contribute 0 loss."""
    rem = (-flat.shape[0]) % multiple
    if rem:
        flat = jnp.concatenate([flat, jnp.full((rem,), value, flat.dtype)])
    return flat


def entropy_loss(outputs, labels, *, tile_rows=1024):
    """Mean binary cross entropy over all elements (matches F.binary_cross_entropy)."""
    total_n = outputs.size
    p_flat = outputs.reshape(-1)
    y_flat = labels.reshape(-1)  # labels.float() happens in-kernel via astype

    cost = pl.CostEstimate(
        flops=5 * total_n,
        transcendentals=2 * total_n,
        bytes_accessed=total_n * (outputs.dtype.itemsize + labels.dtype.itemsize) + 4,
    )

    rows = pl.cdiv(total_n, _LANES)

    if rows <= _SMALL_ROWS:
        # --- single ungridded invocation: no grid, no accumulator, no branches
        p_flat = _pad_flat(p_flat, _LANES, 1.0)
        y_flat = _pad_flat(y_flat, _LANES, 1.0)
        p2d = p_flat.reshape(rows, _LANES)
        y2d = y_flat.reshape(rows, _LANES)

        kernel = functools.partial(_bce_single_kernel, total_n=float(total_n))
        out = pl.pallas_call(
            kernel,
            out_shape=jax.ShapeDtypeStruct((1, 1), jnp.float32),
            in_specs=[
                pl.BlockSpec((rows, _LANES), lambda: (0, 0)),
                pl.BlockSpec((rows, _LANES), lambda: (0, 0)),
            ],
            out_specs=pl.BlockSpec((1, 1), lambda: (0, 0)),
            cost_estimate=cost,
        )(p2d, y2d)
        return out[0, 0]

    # --- general tiled path for large inputs ------------------------------
    # 1024x128 f32 block = 512 KiB; 2 inputs x 2 pipeline buffers = 2 MiB,
    # well inside the scoped VMEM budget on v5e/v6e/v7x, and fewer grid steps
    # than a 512-row tile for this memory-bound reduction.
    chunk = tile_rows * _LANES
    p_flat = _pad_flat(p_flat, chunk, 1.0)
    y_flat = _pad_flat(y_flat, chunk, 1.0)
    rows_p = p_flat.shape[0] // _LANES
    p2d = p_flat.reshape(rows_p, _LANES)
    y2d = y_flat.reshape(rows_p, _LANES)
    grid = (rows_p // tile_rows,)

    kernel = functools.partial(_bce_tiled_kernel, total_n=float(total_n))
    out = pl.pallas_call(
        kernel,
        out_shape=jax.ShapeDtypeStruct((1, 1), jnp.float32),
        grid_spec=pltpu.PrefetchScalarGridSpec(
            num_scalar_prefetch=0,
            grid=grid,
            in_specs=[
                pl.BlockSpec((tile_rows, _LANES), lambda i: (i, 0)),
                pl.BlockSpec((tile_rows, _LANES), lambda i: (i, 0)),
            ],
            out_specs=pl.BlockSpec((1, 1), lambda i: (0, 0)),
            scratch_shapes=[pltpu.VMEM((8, _LANES), jnp.float32)],
        ),
        compiler_params=pltpu.CompilerParams(
            # running accumulator across the grid -> must stay sequential
            dimension_semantics=("arbitrary",),
        ),
        cost_estimate=cost,
    )(p2d, y2d)
    return out[0, 0]


def entropy_loss_ref(outputs, labels):
    p = outputs.astype(jnp.float32)
    y = labels.astype(jnp.float32)
    log_p = jnp.maximum(jnp.log(p), -100.0)
    log_1mp = jnp.maximum(jnp.log(1.0 - p), -100.0)
    return jnp.mean(-(y * log_p + (1.0 - y) * log_1mp))


if __name__ == "__main__":
    key = jax.random.PRNGKey(0)
    k1, k2 = jax.random.split(key)

    # NCHW, small shapes: batch=2, channels=4, spatial=16x16
    shape = (2, 4, 16, 16)
    # outputs must be probabilities in (0,1) for binary_cross_entropy
    outputs = jax.random.uniform(
        k1, shape, dtype=jnp.float32, minval=1e-4, maxval=1.0 - 1e-4
    )
    labels = (jax.random.uniform(k2, shape) > 0.5).astype(jnp.float32)

    loss = entropy_loss(outputs, labels)
    loss = jax.block_until_ready(loss)

    ref = entropy_loss_ref(outputs, labels)
    assert jnp.allclose(loss, ref, rtol=1e-5, atol=1e-5), (loss, ref)

    # Also exercise the tiled path once (larger input) to keep it honest.
    big_shape = (8, 8, 128, 128)  # 1,048,576 elements -> 8192 rows of 128
    bp = jax.random.uniform(
        k1, big_shape, dtype=jnp.float32, minval=1e-4, maxval=1.0 - 1e-4
    )
    by = (jax.random.uniform(k2, big_shape) > 0.5).astype(jnp.float32)
    big_loss = jax.block_until_ready(entropy_loss(bp, by))
    big_ref = entropy_loss_ref(bp, by)
    assert jnp.allclose(big_loss, big_ref, rtol=1e-5, atol=1e-5), (big_loss, big_ref)

    print("KERNEL_OK")
</pallas_src>

<mosaic_0001>
module attributes {stable_mosaic.version = 11 : i64} {
  func.func @_bce_single_kernel(%arg0: memref<16x128xf32, #tpu.memory_space<vmem>>, %arg1: memref<16x128xf32, #tpu.memory_space<vmem>>, %arg2: memref<1x1xf32, #tpu.memory_space<vmem>>) attributes {dimension_semantics = [], scalar_prefetch = 0 : i64, scratch_operands = 0 : i64, tpu.core_type = #tpu.core_type<tc>} {
    %c0 = arith.constant 0 : index
    %c0_0 = arith.constant 0 : index
    %0 = vector.load %arg0[%c0, %c0_0] : memref<16x128xf32, #tpu.memory_space<vmem>>, vector<16x128xf32>
    %c0_1 = arith.constant 0 : index
    %c0_2 = arith.constant 0 : index
    %1 = vector.load %arg1[%c0_1, %c0_2] : memref<16x128xf32, #tpu.memory_space<vmem>>, vector<16x128xf32>
    %2 = math.log %0 : vector<16x128xf32>
    %cst = arith.constant -1.000000e+02 : f32
    %3 = vector.broadcast %cst : f32 to vector<16x128xf32>
    %4 = arith.maximumf %2, %3 : vector<16x128xf32>
    %cst_3 = arith.constant 1.000000e+00 : f32
    %5 = vector.broadcast %cst_3 : f32 to vector<16x128xf32>
    %6 = arith.subf %5, %0 : vector<16x128xf32>
    %7 = math.log %6 : vector<16x128xf32>
    %cst_4 = arith.constant -1.000000e+02 : f32
    %8 = vector.broadcast %cst_4 : f32 to vector<16x128xf32>
    %9 = arith.maximumf %7, %8 : vector<16x128xf32>
    %10 = arith.mulf %1, %4 : vector<16x128xf32>
    %cst_5 = arith.constant 1.000000e+00 : f32
    %11 = vector.broadcast %cst_5 : f32 to vector<16x128xf32>
    %12 = arith.subf %11, %1 : vector<16x128xf32>
    %13 = arith.mulf %12, %9 : vector<16x128xf32>
    %14 = arith.addf %10, %13 : vector<16x128xf32>
    %cst_6 = arith.constant 0.000000e+00 : f32
    %15 = vector.broadcast %cst_6 : f32 to vector<16x128xf32>
    %16 = arith.subf %15, %14 : vector<16x128xf32>
    %17 = vector.shape_cast %16 : vector<16x128xf32> to vector<1x16x128xf32>
    %cst_7 = arith.constant dense<0.000000e+00> : vector<1xf32>
    %18 = vector.multi_reduction <add>, %17, %cst_7 [1, 2] : vector<1x16x128xf32> to vector<1xf32>
    %19 = vector.shape_cast %18 : vector<1xf32> to vector<1x1x1xf32>
    %20 = vector.extract %19[0, 0, 0] : f32 from vector<1x1x1xf32>
    %cst_8 = arith.constant 2.048000e+03 : f32
    %21 = arith.divf %20, %cst_8 : f32
    %22 = vector.broadcast %21 : f32 to vector<1x1xf32>
    %c0_9 = arith.constant 0 : index
    %c0_10 = arith.constant 0 : index
    %23 = vector.load %arg2[%c0_9, %c0_10] : memref<1x1xf32, #tpu.memory_space<vmem>>, vector<1x1xf32>
    tpu.vector_store %arg2[%c0_9, %c0_10], %22 {strides = array<i32>} : memref<1x1xf32, #tpu.memory_space<vmem>>, vector<1x1xf32>,
    return
  }
}

</mosaic_0001>

<llo_original>
// kernel: tpu_custom_call.1
$region0: #{tpu_custom_call.1}
  #allocation0 [shape = 'u32[]', space=smem, size = 0x4, offset = 0x4, fixed_abs, tag = 'smem constant byte address 0x4 - core index']
  #allocation1 [shape = 'u32[144,128]{1,0:T(1,128)}', space=vmem, size = 0x12000, scoped, tag = 'internal scratch']
  %s0 = inlined_call_operand.hbm [shape: f32[16,128], index: 0, kind: input, shape index: {}]
  %s1 = inlined_call_operand.hbm [shape: f32[16,128], index: 1, kind: input, shape index: {}]
  %s2 = inlined_call_operand.hbm [shape: f32[1,1], index: 2, kind: output, shape index: {}]
  %s3 = sld [smem:[#allocation0]]
  $region26: #{tpu_custom_call.1} parent=0
    _
  %s5 = ssub.s32 1, %s3
  %s6 = scalar_select 0, %s5, %s3
  $region1: #{tpu_custom_call.1} parent=0
    #allocation2 [shape = 'u8[8192]{0}', space=vmem, size = 0x2000, scoped, tag = 'input window, operand 0, single buffered']
    #allocation3 [shape = 's32[1]{0}', space=sflag, size = 0x4, scoped, tag = 'scoped memory for tpu_custom_call.1']
    #allocation4 [shape = 's32[1]{0}', space=sflag, size = 0x4, scoped, tag = 'scoped memory for tpu_custom_call.1']
    #allocation5 [shape = 'u8[8192]{0}', space=vmem, size = 0x2000, scoped, tag = 'input window, operand 1, single buffered']
    #allocation6 [shape = 's32[1]{0}', space=sflag, size = 0x4, scoped, tag = 'scoped memory for tpu_custom_call.1']
    #allocation7 [shape = 'u8[512]{0}', space=vmem, size = 0x400, scoped, tag = 'output window, operand 0, single buffered']
    %7 = vsyncpa [#allocation3], 0
    %8 = vsyncpa [#allocation6], 0
    %9 = vsyncpa [#allocation4], 0
    // Predicated region
    $region2: #{tpu_custom_call.1} parent=1 // pred_check
      _
    $region3: #{tpu_custom_call.1} parent=1 // pred_check_branch
      %11 = sbr.rel (0) target = $region5
    $region4: #{tpu_custom_call.1} parent=1 // pred_region
      %s13 = ssub.s32 256, 256
      %14 = vsyncadd [#allocation3], %s13
      %s15 = sshll.u32 [#allocation2], 4
      %s16 = int_to_ptr.vmem [resolvable:$true] %s15
      %21 = dma.hbm_to_vmem [thread:$0]  %s0, 256, %s16, [#allocation3], 128, 128, 8
    $region5: #{tpu_custom_call.1} parent=1 // pred_fallthru
      _
    // Predicated region
    $region6: #{tpu_custom_call.1} parent=1 // pred_check
      _
    $region7: #{tpu_custom_call.1} parent=1 // pred_check_branch
      %23 = sbr.rel (0) target = $region9
    $region8: #{tpu_custom_call.1} parent=1 // pred_region
      %s25 = ssub.s32 256, 256
      %26 = vsyncadd [#allocation6], %s25
      %s27 = sshll.u32 [#allocation5], 4
      %s28 = int_to_ptr.vmem [resolvable:$true] %s27
      %33 = dma.hbm_to_vmem [thread:$0]  %s1, 256, %s28, [#allocation6], 128, 128, 8
    $region9: #{tpu_custom_call.1} parent=1 // pred_fallthru
      _
    // Predicated region
    $region10: #{tpu_custom_call.1} parent=1 // pred_check
      _
    $region11: #{tpu_custom_call.1} parent=1 // pred_check_branch
      %35 = sbr.rel (0) target = $region13
    $region12: #{tpu_custom_call.1} parent=1 // pred_region
      %36 = dma.done [#allocation3], 256
    $region13: #{tpu_custom_call.1} parent=1 // pred_fallthru
      _
    // Predicated region
    $region14: #{tpu_custom_call.1} parent=1 // pred_check
      _
    $region15: #{tpu_custom_call.1} parent=1 // pred_check_branch
      %38 = sbr.rel (0) target = $region17
    $region16: #{tpu_custom_call.1} parent=1 // pred_region
      %39 = dma.done [#allocation6], 256
    $region17: #{tpu_custom_call.1} parent=1 // pred_fallthru
      _
    %v40 = vld [vmem:[#allocation2] sm:$0xff]
    %v41 = vld [vmem:[#allocation2 + $0x8] sm:$0xff]
    %v42 = vld [vmem:[#allocation5] sm:$0xff]
    %v43 = vld [vmem:[#allocation5 + $0x8] sm:$0xff]
    %v44 = vlog2.pop %v40
    %v45 = vmul.f32 %v44, 0.6931472
    %v46 = vlog2.pop %v41
    %v47 = vmul.f32 %v46, 0.6931472
    %v48 = vmax.f32 %v45, -100.0
    %v49 = vmax.f32 %v47, -100.0
    %v50 = vsub.f32 1.0, %v40
    %v51 = vsub.f32 1.0, %v41
    %v52 = vlog2.pop %v50
    %v53 = vmul.f32 %v52, 0.6931472
    %v54 = vlog2.pop %v51
    %v55 = vmul.f32 %v54, 0.6931472
    %v56 = vmax.f32 %v53, -100.0
    %v57 = vmax.f32 %v55, -100.0
    %v58 = vmul.f32 %v42, %v48
    %v59 = vmul.f32 %v43, %v49
    %v60 = vsub.f32 1.0, %v42
    %v61 = vsub.f32 1.0, %v43
    %v62 = vmul.f32 %v60, %v56
    %v63 = vmul.f32 %v61, %v57
    %v64 = vadd.f32 %v58, %v62
    %v65 = vadd.f32 %v59, %v63
    %v66 = vsub.f32 0.0, %v64
    %v67 = vsub.f32 0.0, %v65
    %v68 = vadd.f32 %v66, %v67
    %69 = vadd.xlane.f32.xlu0 %v68
    %v70 = vpop.xlane.xlu0 %69
    %v71 = vrot.slane %v70, 4
    %v72 = vadd.f32 %v70, %v71
    %v73 = vrot.slane %v72, 2
    %v74 = vadd.f32 %v72, %v73
    %v75 = vrot.slane %v74, 1
    %v76 = vadd.f32 %v74, %v75
    %s77 = vtos %v76
    %v78 = vrcp.pop 2048.0
    %s79 = vtos %v78
    %s80 = smul.f32 %s77, %s79
    %v81 = vstv %s80
    %vm82 = vcmask 0
    %83 = vst.msk [vmem:[#allocation7] sm:$0x1] %vm82, %v81
    // Predicated region
    $region18: #{tpu_custom_call.1} parent=1 // pred_check
      _
    $region19: #{tpu_custom_call.1} parent=1 // pred_check_branch
      %85 = sbr.rel (0) target = $region21
    $region20: #{tpu_custom_call.1} parent=1 // pred_region
      %s87 = ssub.s32 16, 16
      %88 = vsyncadd [#allocation4], %s87
      %s90 = sshll.u32 [#allocation7], 4
      %s91 = int_to_ptr.vmem [resolvable:$true] %s90
      %93 = dma.vmem_to_hbm [thread:$0]  %s91, 16, %s2, [#allocation4]
    $region21: #{tpu_custom_call.1} parent=1 // pred_fallthru
      _
    // Predicated region
    $region22: #{tpu_custom_call.1} parent=1 // pred_check
      _
    $region23: #{tpu_custom_call.1} parent=1 // pred_check_branch
      %95 = sbr.rel (0) target = $region25
    $region24: #{tpu_custom_call.1} parent=1 // pred_region
      %96 = dma.done [#allocation4], 16
    $region25: #{tpu_custom_call.1} parent=1 // pred_fallthru
      _
    %97 = vsyncpa [#allocation3], 1
    %98 = vsyncpa [#allocation6], 1
    %99 = vsyncpa [#allocation4], 1

</llo_original>
